<compile_context>
chip_gen: v5e
topology: v5e:2x2
jax: 0.10.0
libtpu: 0.0.40
codegen_flags: <defaults>
</compile_context>

<pallas_src>
import jax
import jax.numpy as jnp
from jax.experimental import pallas as pl
from jax.experimental.pallas import tpu as pltpu


def _round_up(x, m):
    return ((x + m - 1) // m) * m


def _vmem_budget_bytes():
    """~75% of physical per-core VMEM: 96 MiB on v5e/v6e (128 MiB), 48 MiB on v7x (64 MiB)."""
    try:
        cap = int(pltpu.get_tpu_info().vmem_capacity_bytes)
    except Exception:
        cap = 64 << 20  # conservative (v7x-sized) default if the query is unavailable
    return (cap * 3) // 4


def _choose_tiles(B, F, K, x_bytes, w_bytes, vmem_budget, tm, tn):
    """Pick (tm, tn) row/column tiles sized against the VMEM budget."""
    tn_cap = 512                       # 2x256 MXU N fill on v6e/v7x; VMEM-safe on v7x
    if tn is None:
        tn = F
        if F > tn_cap:
            for cand in (512, 384, 256, 128):
                if F % cand == 0:      # avoid hard "F % 512 == 0" assert (F=768, 1280, ...)
                    tn = cand
                    break
    assert tn == F or (F % tn == 0 and tn % 128 == 0), "tn must divide F and be lane-aligned"

    row_align = max(8, 32 // x_bytes)  # 8 rows for f32, 16 for bf16 (sublane packing)
    if tm is None:
        tm_cap = 256                   # raised from 128 per perf review
        avg = max(B // max(K, 1), 1)
        tm = min(tm_cap, max(row_align, _round_up(avg, row_align)))
    assert tm % row_align == 0, "tm must be sublane-aligned for the input dtype"

    # Double-buffered per-step working set: x block + W slab + bias slab + out block.
    def working_set(tm_, tn_):
        return 2 * (tm_ * F * x_bytes + F * tn_ * w_bytes + tn_ * w_bytes + tm_ * tn_ * x_bytes)

    while tm > row_align and working_set(tm, tn) > vmem_budget:
        tm -= row_align
    return tm, tn


def _grouped_selection_kernel(tile_expert_ref, tile_valid_ref,
                              x_ref, w_ref, b_ref, o_ref):
    # tile_expert_ref / tile_valid_ref: SMEM (num_tiles,) int32 scalar prefetch.
    # x_ref: (TM, F)  row tile of sorted+padded samples
    # w_ref: (F, TN)  weight slab of the expert owning this row tile
    # b_ref: (1, TN)  bias slab of that expert
    # o_ref: (TM, TN)
    i = pl.program_id(1)               # row-tile axis (innermost grid dim)

    @pl.when(tile_valid_ref[i] > 0)    # skip pure-padding tiles: no MXU, no store
    def _():
        y = jnp.dot(x_ref[...], w_ref[...], preferred_element_type=jnp.float32)
        y = y + b_ref[...]
        o_ref[...] = y.astype(o_ref.dtype)


def selection_forward(xs, mxs, actions, weights, biases, *,
                      tm=None, tn=None, weight_dtype=None):
    """Routed forward: ys[i] = xs[i] @ weights[actions[i]] + biases[actions[i]].

    xs:      [B, F] float32
    actions: [B]    int32, values in [0, K)
    weights: [K, F, F] (in, out layout)
    biases:  [K, F]
    weight_dtype: optional (e.g. jnp.bfloat16) compute dtype for x/W/b; output
                  stays in xs.dtype, accumulation stays f32.
    Returns (ys [B, F], mxs, actions) mirroring the PyTorch module's tuple.
    """
    B, F = xs.shape
    K, f_in, f_out = weights.shape
    assert f_in == F and f_out == F

    out_dtype = xs.dtype
    if weight_dtype is not None:
        weights = weights.astype(weight_dtype)
        biases = biases.astype(weight_dtype)
        xs_k = xs.astype(weight_dtype)
    else:
        xs_k = xs

    # Robustness: clamp out-of-range actions so the data-dependent weight DMA
    # can never go out of bounds.
    actions_i = jnp.clip(actions.astype(jnp.int32), 0, K - 1)

    # ---- small-F fallback: Pallas path is strictly slower than XLA here -----
    if F < 128:
        ys = jnp.einsum("bf,bfo->bo", xs_k, weights[actions_i],
                        preferred_element_type=jnp.float32) + biases[actions_i]
        return ys.astype(out_dtype), mxs, actions

    x_bytes = jnp.dtype(xs_k.dtype).itemsize
    w_bytes = jnp.dtype(weights.dtype).itemsize
    vmem_budget = _vmem_budget_bytes()
    tm, tn = _choose_tiles(B, F, K, x_bytes, w_bytes, vmem_budget, tm, tn)

    # ---- prep outside the kernel: sort by expert & pad each group to TM rows ----
    order = jnp.argsort(actions_i)                      # sample indices grouped by expert
    sorted_actions = actions_i[order]
    counts = jnp.bincount(actions_i, length=K).astype(jnp.int32)
    padded_counts = (((counts + tm - 1) // tm) * tm).astype(jnp.int32)
    padded_offsets = jnp.concatenate(
        [jnp.zeros((1,), jnp.int32), jnp.cumsum(padded_counts)[:-1].astype(jnp.int32)])
    group_start = jnp.concatenate(
        [jnp.zeros((1,), jnp.int32), jnp.cumsum(counts)[:-1].astype(jnp.int32)])

    # Static worst-case padded row count (sum_k ceil(c_k/tm)*tm <= B + K*(tm-1)).
    P = _round_up(B + K * (tm - 1), tm)
    num_tiles = P // tm

    j = jnp.arange(B, dtype=jnp.int32)
    dest = padded_offsets[sorted_actions] + (j - group_start[sorted_actions])
    x_padded = jnp.zeros((P, F), xs_k.dtype).at[dest].set(xs_k[order])

    # Expert id owning each row tile + number of real (non-padding) rows per tile.
    padded_ends = jnp.cumsum(padded_counts).astype(jnp.int32)
    tile_start = jnp.arange(num_tiles, dtype=jnp.int32) * tm
    tile_expert = jnp.minimum(
        jnp.searchsorted(padded_ends, tile_start, side="right"), K - 1).astype(jnp.int32)
    valid_mask = jnp.zeros((P,), jnp.int32).at[dest].set(1)
    tile_valid = valid_mask.reshape(num_tiles, tm).sum(axis=1).astype(jnp.int32)
    # Point dead (pure-padding) tiles at the expert of the last live tile so
    # consecutive dead tiles revisit the SAME weight block and its DMA is elided.
    num_live_tiles = (jnp.sum(padded_counts) // tm).astype(jnp.int32)
    last_live = jnp.maximum(num_live_tiles - 1, 0)
    tile_expert = jnp.where(jnp.arange(num_tiles, dtype=jnp.int32) < num_live_tiles,
                            tile_expert, tile_expert[last_live]).astype(jnp.int32)

    b3 = biases.reshape(K, 1, F)

    # Weight layout: when the N dim is tiled, pre-pack to (K, F//tn, F, tn) so
    # each fetched slab is HBM-contiguous instead of a strided DMA.
    # TODO(synk): in a real model pre-pack the weights once at init, not per call.
    if tn < F:
        w_packed = weights.reshape(K, F, F // tn, tn).transpose(0, 2, 1, 3)
        w_spec = pl.BlockSpec((None, None, F, tn),
                              lambda n, i, ge, vc: (ge[i], n, 0, 0))
    else:
        w_packed = weights
        w_spec = pl.BlockSpec((None, F, tn), lambda n, i, ge, vc: (ge[i], 0, 0))

    grid_spec = pltpu.PrefetchScalarGridSpec(
        num_scalar_prefetch=2,
        # Row-tile axis INNERMOST: consecutive same-expert row tiles hit the
        # identical weight block index -> the large W slab DMA is skipped; only
        # the smaller x tile is re-fetched each step.
        grid=(F // tn, num_tiles),
        in_specs=[
            pl.BlockSpec((tm, F), lambda n, i, ge, vc: (i, 0)),              # x row tile
            w_spec,                                                          # selected W slab
            pl.BlockSpec((None, 1, tn), lambda n, i, ge, vc: (ge[i], 0, n)),  # selected bias
        ],
        out_specs=pl.BlockSpec((tm, tn), lambda n, i, ge, vc: (i, n)),
    )

    ys_padded = pl.pallas_call(
        _grouped_selection_kernel,
        out_shape=jax.ShapeDtypeStruct((P, F), out_dtype),
        grid_spec=grid_spec,
        compiler_params=pltpu.CompilerParams(
            dimension_semantics=("parallel", "parallel"),
            vmem_limit_bytes=int(vmem_budget),
        ),
    )(tile_expert, tile_valid, x_padded, w_packed, b3)

    # Fused un-permute: one scatter of `dest` back to original sample order,
    # then ONE gather (replaces argsort(order) + double gather).
    orig_dest = jnp.zeros((B,), jnp.int32).at[order].set(dest)
    ys = ys_padded[orig_dest]

    # The PyTorch module returns (ys, mxs, actions); mxs is passed through.
    # TODO(synk): start_logging_selections / selection_log is host-side Python
    # state, not kernel compute; omitted.
    return ys, mxs, actions


def _init_experts(key, num_experts, features):
    """Deterministic nn.Linear-style init for K experts (weight stored [in, out])."""
    kw, kb = jax.random.split(key)
    bound = 1.0 / jnp.sqrt(features)
    w = jax.random.uniform(kw, (num_experts, features, features),
                           minval=-bound, maxval=bound, dtype=jnp.float32)
    b = jax.random.uniform(kb, (num_experts, features),
                           minval=-bound, maxval=bound, dtype=jnp.float32)
    return w, b


def _reference(xs, actions, weights, biases):
    return jnp.einsum("bf,bfo->bo", xs, weights[actions]) + biases[actions]


if __name__ == "__main__":
    k = jax.random.split(jax.random.PRNGKey(0), 9)

    # ---------- 1) main Pallas path: F = 128, f32 ----------
    B, F, K = 64, 128, 4
    xs = jax.random.normal(k[0], (B, F), dtype=jnp.float32)
    actions = jax.random.randint(k[1], (B,), 0, K, dtype=jnp.int32)
    mxs = [None] * B                        # meta objects: pure pass-through
    weights, biases = _init_experts(k[2], K, F)

    ys, mxs_out, actions_out = selection_forward(xs, mxs, actions, weights, biases)
    ys = jax.block_until_ready(ys)
    ref = _reference(xs, actions, weights, biases)
    assert ys.shape == (B, F)
    assert jnp.allclose(ys, ref, atol=1e-4, rtol=1e-4), "f32 kernel mismatch"

    # ---------- 2) tiled-N path (tn < F): pre-packed contiguous weight slabs ----------
    B2, F2, K2 = 32, 256, 2
    xs2 = jax.random.normal(k[3], (B2, F2), dtype=jnp.float32)
    actions2 = jax.random.randint(k[4], (B2,), 0, K2, dtype=jnp.int32)
    weights2, biases2 = _init_experts(k[5], K2, F2)
    ys2, _, _ = selection_forward(xs2, [None] * B2, actions2, weights2, biases2, tn=128)
    ys2 = jax.block_until_ready(ys2)
    ref2 = _reference(xs2, actions2, weights2, biases2)
    assert jnp.allclose(ys2, ref2, atol=1e-4, rtol=1e-4), "tiled-N kernel mismatch"

    # ---------- 3) bf16 weight/activation path (halved weight HBM stream) ----------
    ys3, _, _ = selection_forward(xs, mxs, actions, weights, biases,
                                  weight_dtype=jnp.bfloat16)
    ys3 = jax.block_until_ready(ys3)
    assert ys3.dtype == xs.dtype
    assert jnp.allclose(ys3, ref, atol=5e-2, rtol=5e-2), "bf16 kernel drift too large"

    # ---------- 4) small-F fallback (F < 128 -> plain XLA path) ----------
    B4, F4, K4 = 8, 32, 4
    xs4 = jax.random.normal(k[6], (B4, F4), dtype=jnp.float32)
    actions4 = jax.random.randint(k[7], (B4,), 0, K4, dtype=jnp.int32)
    weights4, biases4 = _init_experts(k[8], K4, F4)
    ys4, _, _ = selection_forward(xs4, [None] * B4, actions4, weights4, biases4)
    ys4 = jax.block_until_ready(ys4)
    ref4 = _reference(xs4, actions4, weights4, biases4)
    assert jnp.allclose(ys4, ref4, atol=1e-5, rtol=1e-5), "small-F fallback mismatch"

    print("KERNEL_OK")
</pallas_src>

<mosaic_0001>
module attributes {stable_mosaic.version = 11 : i64} {
  func.func @_grouped_selection_kernel(%arg0: i32, %arg1: i32, %arg2: memref<8xi32, #tpu.memory_space<smem>>, %arg3: memref<8xi32, #tpu.memory_space<smem>>, %arg4: memref<16x128xf32, #tpu.memory_space<vmem>>, %arg5: memref<1x128x128xf32, #tpu.memory_space<vmem>>, %arg6: memref<1x1x128xf32, #tpu.memory_space<vmem>>, %arg7: memref<16x128xf32, #tpu.memory_space<vmem>>) attributes {dimension_semantics = [#tpu.dimension_semantics<parallel>, #tpu.dimension_semantics<parallel>], iteration_bounds = array<i64: 1, 8>, scalar_prefetch = 2 : i64, scratch_operands = 0 : i64, tpu.core_type = #tpu.core_type<tc>, window_params = [{transform_indices = @transform_0, window_bounds = array<i64: 16, 128>}, {transform_indices = @transform_1, window_bounds = array<i64: 1, 128, 128>}, {transform_indices = @transform_2, window_bounds = array<i64: 1, 1, 128>}, {transform_indices = @transform_3, window_bounds = array<i64: 16, 128>}]} {
    %0 = arith.index_cast %arg1 : i32 to index
    %1 = memref.load %arg3[%0] : memref<8xi32, #tpu.memory_space<smem>>
    %c0_i32 = arith.constant 0 : i32
    %2 = arith.cmpi sgt, %1, %c0_i32 : i32
    %3 = arith.extui %2 : i1 to i32
    %c0_i32_0 = arith.constant 0 : i32
    %4 = arith.cmpi ne, %3, %c0_i32_0 : i32
    scf.if %4 {
      %c0 = arith.constant 0 : index
      %c0_1 = arith.constant 0 : index
      %5 = vector.load %arg4[%c0, %c0_1] : memref<16x128xf32, #tpu.memory_space<vmem>>, vector<16x128xf32>
      %c0_2 = arith.constant 0 : index
      %c0_3 = arith.constant 0 : index
      %c0_4 = arith.constant 0 : index
      %6 = vector.load %arg5[%c0_2, %c0_3, %c0_4] : memref<1x128x128xf32, #tpu.memory_space<vmem>>, vector<1x128x128xf32>
      %7 = vector.shape_cast %6 : vector<1x128x128xf32> to vector<128x128xf32>
      %cst = arith.constant dense<0.000000e+00> : vector<16x128xf32>
      %8 = tpu.matmul %5, %7, %cst {dimension_numbers = #tpu.dot_dimension_numbers<[1], [0], [0], [1], [0, 0, 1, 1], [], []>} : vector<16x128xf32>, vector<128x128xf32>, vector<16x128xf32> -> vector<16x128xf32>
      %c0_5 = arith.constant 0 : index
      %c0_6 = arith.constant 0 : index
      %c0_7 = arith.constant 0 : index
      %9 = vector.load %arg6[%c0_5, %c0_6, %c0_7] : memref<1x1x128xf32, #tpu.memory_space<vmem>>, vector<1x1x128xf32>
      %10 = vector.shape_cast %9 : vector<1x1x128xf32> to vector<1x128xf32>
      %11 = vector.broadcast %10 : vector<1x128xf32> to vector<16x128xf32>
      %12 = arith.addf %8, %11 : vector<16x128xf32>
      %c0_8 = arith.constant 0 : index
      %c0_9 = arith.constant 0 : index
      %13 = vector.load %arg7[%c0_8, %c0_9] : memref<16x128xf32, #tpu.memory_space<vmem>>, vector<16x128xf32>
      tpu.vector_store %arg7[%c0_8, %c0_9], %12 {strides = array<i32>} : memref<16x128xf32, #tpu.memory_space<vmem>>, vector<16x128xf32>,
    } else {
    }
    return
  }
  func.func @transform_0(%arg0: i32, %arg1: i32, %arg2: memref<8xi32, #tpu.memory_space<smem>>, %arg3: memref<8xi32, #tpu.memory_space<smem>>) -> (i32, i32) {
    %c0_i32 = arith.constant 0 : i32
    %c0_i32_0 = arith.constant 0 : i32
    return %arg1, %c0_i32 : i32, i32
  }
  func.func @transform_1(%arg0: i32, %arg1: i32, %arg2: memref<8xi32, #tpu.memory_space<smem>>, %arg3: memref<8xi32, #tpu.memory_space<smem>>) -> (i32, i32, i32) {
    %0 = arith.index_cast %arg1 : i32 to index
    %1 = memref.load %arg2[%0] : memref<8xi32, #tpu.memory_space<smem>>
    %c0_i32 = arith.constant 0 : i32
    %c0_i32_0 = arith.constant 0 : i32
    %c0_i32_1 = arith.constant 0 : i32
    return %1, %c0_i32, %c0_i32_0 : i32, i32, i32
  }
  func.func @transform_2(%arg0: i32, %arg1: i32, %arg2: memref<8xi32, #tpu.memory_space<smem>>, %arg3: memref<8xi32, #tpu.memory_space<smem>>) -> (i32, i32, i32) {
    %0 = arith.index_cast %arg1 : i32 to index
    %1 = memref.load %arg2[%0] : memref<8xi32, #tpu.memory_space<smem>>
    %c0_i32 = arith.constant 0 : i32
    %c0_i32_0 = arith.constant 0 : i32
    return %1, %c0_i32, %arg0 : i32, i32, i32
  }
  func.func @transform_3(%arg0: i32, %arg1: i32, %arg2: memref<8xi32, #tpu.memory_space<smem>>, %arg3: memref<8xi32, #tpu.memory_space<smem>>) -> (i32, i32) {
    %c0_i32 = arith.constant 0 : i32
    return %arg1, %arg0 : i32, i32
  }
}

</mosaic_0001>

<llo_original>
// kernel: tpu_custom_call.1
$region0: #{tpu_custom_call.1}
  #allocation0 [shape = 'u32[]', space=smem, size = 0x4, offset = 0x4, fixed_abs, tag = 'smem constant byte address 0x4 - core index']
  #allocation1 [shape = 'u32[72,128]{1,0:T(1,128)}', space=vmem, size = 0x9000, scoped, tag = 'internal scratch']
  #allocation2 [shape = 's32[1]{0}', space=sflag, size = 0x4, scoped, tag = 'scoped memory for tpu_custom_call.1']
  #allocation3 [shape = 'u8[512]{0}', space=smem, size = 0x200, scoped, tag = 'prefetched SMEM operand 0']
  #allocation4 [shape = 'u8[512]{0}', space=smem, size = 0x200, scoped, tag = 'prefetched SMEM operand 1']
  %s0 = inlined_call_operand.hbm [shape: s32[8], index: 0, kind: input, shape index: {}]
  %s1 = inlined_call_operand.hbm [shape: s32[8], index: 1, kind: input, shape index: {}]
  %s2 = inlined_call_operand.hbm [shape: f32[128,128], index: 2, kind: input, shape index: {}]
  %s3 = inlined_call_operand.hbm [shape: f32[4,128,128], index: 3, kind: input, shape index: {}]
  %s4 = inlined_call_operand.hbm [shape: f32[4,1,128], index: 4, kind: input, shape index: {}]
  %s5 = inlined_call_operand.hbm [shape: f32[128,128], index: 5, kind: output, shape index: {}]
  %s6 = sld [smem:[#allocation0]]
  $region61: #{tpu_custom_call.1} parent=0
    _
  %s8 = ssub.s32 1, %s6
  %s9 = scalar_select 0, %s8, %s6
  %s11 = sshll.u32 %s0, 4
  %s12 = int_to_ptr.hbm [resolvable:$true] %s11
  %14 = dma.hbm_to_smem %s12, 16, [#allocation3], [#allocation2]
  %s16 = sshll.u32 %s1, 4
  %s17 = int_to_ptr.hbm [resolvable:$true] %s16
  %19 = dma.hbm_to_smem %s17, 16, [#allocation4], [#allocation2]
  %21 = dma.done [#allocation2], 32
  %22 = sfence
  $region1: #{tpu_custom_call.1} parent=0
    #allocation5 [shape = 'u8[16384]{0}', space=vmem, size = 0x4000, scoped, tag = 'input window, operand 2']
    #allocation6 [shape = 's32[2]{0}', space=sflag, size = 0x8, scoped, tag = 'scoped memory for tpu_custom_call.1']
    #allocation7 [shape = 's32[2]{0}', space=sflag, size = 0x8, scoped, tag = 'scoped memory for tpu_custom_call.1']
    #allocation8 [shape = 'u8[131072]{0}', space=vmem, size = 0x20000, scoped, tag = 'input window, operand 3']
    #allocation9 [shape = 's32[2]{0}', space=sflag, size = 0x8, scoped, tag = 'scoped memory for tpu_custom_call.1']
    #allocation10 [shape = 'u8[1024]{0}', space=vmem, size = 0x400, scoped, tag = 'input window, operand 4']
    #allocation11 [shape = 'u8[16384]{0}', space=vmem, size = 0x4000, scoped, tag = 'output window, operand 0']
    %23 = vsyncpa [#allocation6], 0
    %s24 = scalar_lea.sflag [#allocation6], 1
    %25 = vsyncpa %s24, 0
    %26 = vsyncpa [#allocation9], 0
    %s27 = scalar_lea.sflag [#allocation9], 1
    %28 = vsyncpa %s27, 0
    %29 = vsyncpa [#allocation7], 0
    %s30 = scalar_lea.sflag [#allocation7], 1
    %31 = vsyncpa %s30, 0
    loop: start=0, step=1, limit=10
    $region2: #{tpu_custom_call.1} parent=1 // loop_pre_header
      _
    $region3: #{tpu_custom_call.1} parent=1 // loop_header
      %s33 = sphi 0, %s37
      %p34 = scmp.ge.s32.totalorder %s33, 10
      %s40 = sphi 0, %s52
      %s41 = sphi 0, %s48
      %s42 = sphi 0, %s40
      %s43 = sphi 0, %s41
      %s44 = sphi 0, %s42
      %s45 = sphi 0, %s43
      %s55 = sphi 0, %s57
      %s58 = sphi 0, %s55
      %s59 = sphi 0, %s58
      %s75 = sphi 0, %s59
      %s83 = sphi 0, %s85
      %s86 = sphi 0, %s83
      %s87 = sphi 0, %s86
      %s103 = sphi 0, %s87
      %s113 = sphi 0, %s115
      %s116 = sphi 0, %s113
      %s117 = sphi 0, %s116
      %s133 = sphi 0, %s117
      %s141 = sphi 0, %s143
      %s144 = sphi 0, %s141
      %s145 = sphi 0, %s144
      %s161 = sphi 0, %s145
    $region4: #{tpu_custom_call.1} parent=1 // loop_header_branch
      %36 = sbr.rel (%p34) target = $region8
    $region5: #{tpu_custom_call.1} parent=1 // loop_body
      %s38 = ssub.s32 %s33, 1
      %s39 = ssub.s32 %s33, 2
      %s46 = sadd.s32 1, %s41
      %p47 = scmp.ge.s32.totalorder %s46, 8
      %s48 = scalar_select %p47, 0, %s46
      %s49 = sadd.s32 1, %s40
      %s50 = scalar_select %p47, %s49, %s40
      %p51 = scmp.ge.s32.totalorder %s50, 1
      %s52 = scalar_select %p51, 0, %s50
      %s53 = ssub.s32 %s41, %s48
      %p54 = scmp.eq.s32.totalorder %s53, 0
      %s56 = sadd.s32 %s55, 1
      %s57 = scalar_select %p54, %s55, %s56
      %p60 = pneg %p54
      %p61 = scmp.eq.s32.totalorder %s33, 7
      %p62 = por %p60, %p61
      %p63 = scmp.ne.s32.totalorder %s55, %s58
      %p64 = scmp.eq.s32.totalorder %s33, 0
      %p65 = por %p63, %p64
      %p66 = scmp.ne.s32.totalorder %s55, %s58
      %p67 = scmp.eq.s32.totalorder %s38, 7
      %p68 = por %p66, %p67
      %p69 = scmp.ne.s32.totalorder %s58, %s59
      %p70 = scmp.eq.s32.totalorder %s38, 0
      %p71 = por %p69, %p70
      %p72 = scmp.ne.s32.totalorder %s58, %s59
      %p73 = scmp.eq.s32.totalorder %s39, 7
      %p74 = por %p72, %p73
      %p76 = scmp.ne.s32.totalorder %s59, %s75
      %p77 = scmp.eq.s32.totalorder %s39, 0
      %p78 = por %p76, %p77
      %s79 = sld [smem:[#allocation3 + %s41]]
      %s80 = sld [smem:[#allocation3 + %s48]]
      %s81 = ssub.s32 %s79, %s80
      %p82 = scmp.eq.s32.totalorder %s81, 0
      %s84 = sadd.s32 %s83, 1
      %s85 = scalar_select %p82, %s83, %s84
      %p88 = pneg %p82
      %p89 = scmp.eq.s32.totalorder %s33, 7
      %p90 = por %p88, %p89
      %p91 = scmp.ne.s32.totalorder %s83, %s86
      %p92 = scmp.eq.s32.totalorder %s33, 0
      %p93 = por %p91, %p92
      %p94 = scmp.ne.s32.totalorder %s83, %s86
      %p95 = scmp.eq.s32.totalorder %s38, 7
      %p96 = por %p94, %p95
      %p97 = scmp.ne.s32.totalorder %s86, %s87
      %p98 = scmp.eq.s32.totalorder %s38, 0
      %p99 = por %p97, %p98
      %p100 = scmp.ne.s32.totalorder %s86, %s87
      %p101 = scmp.eq.s32.totalorder %s39, 7
      %p102 = por %p100, %p101
      %p104 = scmp.ne.s32.totalorder %s87, %s103
      %p105 = scmp.eq.s32.totalorder %s39, 0
      %p106 = por %p104, %p105
      %s107 = sld [smem:[#allocation3 + %s41]]
      %s108 = sld [smem:[#allocation3 + %s48]]
      %s109 = ssub.s32 %s107, %s108
      %s110 = ssub.s32 %s40, %s52
      %s111 = sor.u32 %s109, %s110
      %p112 = scmp.eq.s32.totalorder %s111, 0
      %s114 = sadd.s32 %s113, 1
      %s115 = scalar_select %p112, %s113, %s114
      %p118 = pneg %p112
      %p119 = scmp.eq.s32.totalorder %s33, 7
      %p120 = por %p118, %p119
      %p121 = scmp.ne.s32.totalorder %s113, %s116
      %p122 = scmp.eq.s32.totalorder %s33, 0
      %p123 = por %p121, %p122
      %p124 = scmp.ne.s32.totalorder %s113, %s116
      %p125 = scmp.eq.s32.totalorder %s38, 7
      %p126 = por %p124, %p125
      %p127 = scmp.ne.s32.totalorder %s116, %s117
      %p128 = scmp.eq.s32.totalorder %s38, 0
      %p129 = por %p127, %p128
      %p130 = scmp.ne.s32.totalorder %s116, %s117
      %p131 = scmp.eq.s32.totalorder %s39, 7
      %p132 = por %p130, %p131
      %p134 = scmp.ne.s32.totalorder %s117, %s133
      %p135 = scmp.eq.s32.totalorder %s39, 0
      %p136 = por %p134, %p135
      %s137 = ssub.s32 %s41, %s48
      %s138 = ssub.s32 %s40, %s52
      %s139 = sor.u32 %s137, %s138
      %p140 = scmp.eq.s32.totalorder %s139, 0
      %s142 = sadd.s32 %s141, 1
      %s143 = scalar_select %p140, %s141, %s142
      %p146 = pneg %p140
      %p147 = scmp.eq.s32.totalorder %s33, 7
      %p148 = por %p146, %p147
      %p149 = scmp.ne.s32.totalorder %s141, %s144
      %p150 = scmp.eq.s32.totalorder %s33, 0
      %p151 = por %p149, %p150
      %p152 = scmp.ne.s32.totalorder %s141, %s144
      %p153 = scmp.eq.s32.totalorder %s38, 7
      %p154 = por %p152, %p153
      %p155 = scmp.ne.s32.totalorder %s144, %s145
      %p156 = scmp.eq.s32.totalorder %s38, 0
      %p157 = por %p155, %p156
      %p158 = scmp.ne.s32.totalorder %s144, %s145
      %p159 = scmp.eq.s32.totalorder %s39, 7
      %p160 = por %p158, %p159
      %p162 = scmp.ne.s32.totalorder %s145, %s161
      %p163 = scmp.eq.s32.totalorder %s39, 0
      %p164 = por %p162, %p163
      %p165 = scmp.le.s32.totalorder 1, %s33
      %p166 = scmp.lt.s32.totalorder %s33, 9
      %p167 = pnand %p165, %p166
      %p168 = pneg %p167
      // Predicated region
      $region9: #{tpu_custom_call.1} parent=5 // pred_check
        _
      $region10: #{tpu_custom_call.1} parent=5 // pred_check_branch
        %170 = sbr.rel (%p167) target = $region12
      $region11: #{tpu_custom_call.1} parent=5 // pred_region
        %s171 = ssub.s32 %s33, 1
      $region12: #{tpu_custom_call.1} parent=5 // pred_fallthru
        _
      %p172 = scmp.lt.s32.totalorder %s33, 8
      // Predicated region
      $region13: #{tpu_custom_call.1} parent=5 // pred_check
        %p173 = pneg %p172
      $region14: #{tpu_custom_call.1} parent=5 // pred_check_branch
        %175 = sbr.rel (%p173) target = $region16
      $region15: #{tpu_custom_call.1} parent=5 // pred_region
        // Predicated region
        $region17: #{tpu_custom_call.1} parent=15 // pred_check
          %p176 = pneg %p65
        $region18: #{tpu_custom_call.1} parent=15 // pred_check_branch
          %178 = sbr.rel (%p176) target = $region20
        $region19: #{tpu_custom_call.1} parent=15 // pred_region
          %s179 = sand.u32 %s55, 1
          %s180 = scalar_lea.sflag [#allocation6], %s179
          %s181 = sand.u32 %s55, 1
          %s182 = smul.addr %s181, 16
          %s183 = scalar_lea.vmem [#allocation5], %s182
          %s184 = smul.u32 2, %s41
          %186 = vsyncadd %s180, 0
          %s187 = smul.addr %s184, 8
          %s188 = scalar_lea.hbm %s2, %s187
          %s189 = sshll.u32 %s188, 4
          %s190 = int_to_ptr.hbm [resolvable:$true] %s189
          %s191 = sshll.u32 %s183, 4
          %s192 = int_to_ptr.vmem [resolvable:$true] %s191
          %197 = dma.hbm_to_vmem [thread:$0]  %s190, 256, %s192, %s180, 128, 128, 8
        $region20: #{tpu_custom_call.1} parent=15 // pred_fallthru
          _
        // Predicated region
        $region21: #{tpu_custom_call.1} parent=15 // pred_check
          %p198 = pneg %p93
        $region22: #{tpu_custom_call.1} parent=15 // pred_check_branch
          %200 = sbr.rel (%p198) target = $region24
        $region23: #{tpu_custom_call.1} parent=15 // pred_region
          %s201 = sand.u32 %s33, 1
          %s202 = scalar_lea.sflag [#allocation9], %s201
          %s203 = sand.u32 %s83, 1
          %s204 = smul.addr %s203, 128
          %s205 = scalar_lea.vmem [#allocation8], %s204
          %s206 = sld [smem:[#allocation3 + %s41]]
          %208 = vsyncadd %s202, 0
          %s209 = smul.addr %s206, 16
          %s210 = smul.addr %s209, 8
          %s211 = scalar_lea.hbm %s3, %s210
          %s212 = sshll.u32 %s211, 4
          %s213 = int_to_ptr.hbm [resolvable:$true] %s212
          %s214 = sshll.u32 %s205, 4
          %s215 = int_to_ptr.vmem [resolvable:$true] %s214
          %220 = dma.hbm_to_vmem [thread:$0]  %s213, 2048, %s215, %s202, 128, 128, 8
        $region24: #{tpu_custom_call.1} parent=15 // pred_fallthru
          _
        // Predicated region
        $region25: #{tpu_custom_call.1} parent=15 // pred_check
          %p221 = pneg %p123
        $region26: #{tpu_custom_call.1} parent=15 // pred_check_branch
          %223 = sbr.rel (%p221) target = $region28
        $region27: #{tpu_custom_call.1} parent=15 // pred_region
          %s224 = sand.u32 %s33, 1
          %s225 = scalar_lea.sflag [#allocation9], %s224
          %s226 = sand.u32 %s113, 1
          %s227 = scalar_lea.vmem [#allocation10], %s226
          %s228 = sld [smem:[#allocation3 + %s41]]
          %230 = vsyncadd %s225, 0
          %s231 = sadd.s32 %s40, %s228
          %s232 = scalar_lea.hbm %s4, %s231
          %s234 = sshll.u32 %s232, 4
          %s235 = int_to_ptr.hbm [resolvable:$true] %s234
          %s236 = sshll.u32 %s227, 4
          %s237 = int_to_ptr.vmem [resolvable:$true] %s236
          %239 = dma.hbm_to_vmem [thread:$0]  %s235, 16, %s237, %s225
        $region28: #{tpu_custom_call.1} parent=15 // pred_fallthru
          _
      $region16: #{tpu_custom_call.1} parent=5 // pred_fallthru
        _
      %p240 = scmp.le.s32.totalorder 1, %s33
      %p241 = scmp.lt.s32.totalorder %s33, 9
      %p242 = pnand %p240, %p241
      %p243 = pneg %p242
      // Predicated region
      $region29: #{tpu_custom_call.1} parent=5 // pred_check
        _
      $region30: #{tpu_custom_call.1} parent=5 // pred_check_branch
        %245 = sbr.rel (%p242) target = $region32
      $region31: #{tpu_custom_call.1} parent=5 // pred_region
        %s246 = ssub.s32 %s33, 1
        %s247 = sand.u32 %s58, 1
        %s248 = scalar_lea.sflag [#allocation6], %s247
        %s249 = sand.u32 %s58, 1
        %s250 = smul.addr %s249, 16
        %s251 = scalar_lea.vmem [#allocation5], %s250
        // Predicated region
        $region33: #{tpu_custom_call.1} parent=31 // pred_check
          %p252 = pneg %p71
        $region34: #{tpu_custom_call.1} parent=31 // pred_check_branch
          %254 = sbr.rel (%p252) target = $region36
        $region35: #{tpu_custom_call.1} parent=31 // pred_region
          %256 = dma.done %s248, 256
        $region36: #{tpu_custom_call.1} parent=31 // pred_fallthru
          _
        %s257 = sand.u32 %s38, 1
        %s258 = scalar_lea.sflag [#allocation9], %s257
        %s259 = sand.u32 %s86, 1
        %s260 = smul.addr %s259, 128
        %s261 = scalar_lea.vmem [#allocation8], %s260
        // Predicated region
        $region37: #{tpu_custom_call.1} parent=31 // pred_check
          %p262 = pneg %p99
        $region38: #{tpu_custom_call.1} parent=31 // pred_check_branch
          %264 = sbr.rel (%p262) target = $region40
        $region39: #{tpu_custom_call.1} parent=31 // pred_region
          %266 = dma.done %s258, 2048
        $region40: #{tpu_custom_call.1} parent=31 // pred_fallthru
          _
        %s267 = sand.u32 %s38, 1
        %s268 = scalar_lea.sflag [#allocation9], %s267
        %s269 = sand.u32 %s116, 1
        %s270 = scalar_lea.vmem [#allocation10], %s269
        // Predicated region
        $region41: #{tpu_custom_call.1} parent=31 // pred_check
          %p271 = pneg %p129
        $region42: #{tpu_custom_call.1} parent=31 // pred_check_branch
          %273 = sbr.rel (%p271) target = $region44
        $region43: #{tpu_custom_call.1} parent=31 // pred_region
          %275 = dma.done %s268, 16
        $region44: #{tpu_custom_call.1} parent=31 // pred_fallthru
          _
        %s276 = sand.u32 %s58, 1
        %s277 = scalar_lea.sflag [#allocation6], %s276
        %s278 = sand.u32 %s58, 1
        %s279 = smul.addr %s278, 16
        %s280 = scalar_lea.vmem [#allocation5], %s279
        %p281 = pneg %p71
        %p282 = pneg %p68
        %s283 = sand.u32 %s38, 1
        %s284 = scalar_lea.sflag [#allocation9], %s283
        %s285 = sand.u32 %s86, 1
        %s286 = smul.addr %s285, 128
        %s287 = scalar_lea.vmem [#allocation8], %s286
        %p288 = pneg %p99
        %p289 = pneg %p96
        %s290 = sand.u32 %s38, 1
        %s291 = scalar_lea.sflag [#allocation9], %s290
        %s292 = sand.u32 %s116, 1
        %s293 = scalar_lea.vmem [#allocation10], %s292
        %p294 = pneg %p129
        %p295 = pneg %p126
        %p296 = pneg %p157
        %p297 = pneg %p154
        %s298 = sand.u32 %s144, 1
        %s299 = scalar_lea.sflag [#allocation7], %s298
        %s300 = sand.u32 %s144, 1
        %s301 = smul.addr %s300, 16
        %s302 = scalar_lea.vmem [#allocation11], %s301
        %s303 = smul.u32 2, %s43
        %s304 = sld [smem:[#allocation3 + %s43]]
        %s305 = sld [smem:[#allocation3 + %s43]]
        %s306 = smul.u32 2, %s43
        %s307 = sld [smem:[#allocation4 + %s43]]
        %p308 = scmp.gt.s32.totalorder %s307, 0
        // Predicated region
        $region45: #{tpu_custom_call.1} parent=31 // pred_check
          %p309 = pneg %p308
        $region46: #{tpu_custom_call.1} parent=31 // pred_check_branch
          %311 = sbr.rel (%p309) target = $region48
        $region47: #{tpu_custom_call.1} parent=31 // pred_region
          %v312 = vld [vmem:[%s251] sm:$0xff]
          %v313 = vld [vmem:[%s251 + $0x8] sm:$0xff]
          %v314 = vld [vmem:[%s261] sm:$0xff]
          %v315 = vld [vmem:[%s261 + $0x8] sm:$0xff]
          %v316 = vld [vmem:[%s261 + $0x10] sm:$0xff]
          %v317 = vld [vmem:[%s261 + $0x18] sm:$0xff]
          %v318 = vld [vmem:[%s261 + $0x20] sm:$0xff]
          %v319 = vld [vmem:[%s261 + $0x28] sm:$0xff]
          %v320 = vld [vmem:[%s261 + $0x30] sm:$0xff]
          %v321 = vld [vmem:[%s261 + $0x38] sm:$0xff]
          %v322 = vld [vmem:[%s261 + $0x40] sm:$0xff]
          %v323 = vld [vmem:[%s261 + $0x48] sm:$0xff]
          %v324 = vld [vmem:[%s261 + $0x50] sm:$0xff]
          %v325 = vld [vmem:[%s261 + $0x58] sm:$0xff]
          %v326 = vld [vmem:[%s261 + $0x60] sm:$0xff]
          %v327 = vld [vmem:[%s261 + $0x68] sm:$0xff]
          %v328 = vld [vmem:[%s261 + $0x70] sm:$0xff]
          %v329 = vld [vmem:[%s261 + $0x78] sm:$0xff]
          %v330 = vld [vmem:[%s270] sm:$0x1]
          %v332 = vperm.slane %v330, 0
          %334 = vmatpush.msra.mxu0 %v329
          %335 = vmatpush.msra.mxu0 %v328
          %336 = vmatpush.msra.mxu0 %v327
          %337 = vmatpush.msra.mxu0 %v326
          %338 = vmatpush.msra.mxu0 %v325
          %339 = vmatpush.msra.mxu0 %v324
          %340 = vmatpush.msra.mxu0 %v323
          %341 = vmatpush.msra.mxu0 %v322
          %342 = vmatpush.msra.mxu0 %v321
          %343 = vmatpush.msra.mxu0 %v320
          %344 = vmatpush.msra.mxu0 %v319
          %345 = vmatpush.msra.mxu0 %v318
          %346 = vmatpush.msra.mxu0 %v317
          %347 = vmatpush.msra.mxu0 %v316
          %348 = vmatpush.msra.mxu0 %v315
          %349 = vmatpush.msra.mxu0 %v314
          %350 = vmatmul.f32.gmra.mxu0 %v312
          %v351 = vpop.f32.mrf.mxu0
          %v352 = vadd.f32 %v332, %v351
          %353 = vmatmul.f32.gmra.mxu0 %v313
          %v354 = vpop.f32.mrf.mxu0
          %v355 = vadd.f32 %v332, %v354
          %356 = vdwg.mxu0
          %357 = vst [vmem:[%s302] sm:$0xff] %v352
          %358 = vst [vmem:[%s302 + $0x8] sm:$0xff] %v355
        $region48: #{tpu_custom_call.1} parent=31 // pred_fallthru
          _
        %s359 = sand.u32 %s144, 1
        %s360 = scalar_lea.sflag [#allocation7], %s359
        %s361 = sand.u32 %s144, 1
        %s362 = smul.addr %s361, 16
        %s363 = scalar_lea.vmem [#allocation11], %s362
        // Predicated region
        $region49: #{tpu_custom_call.1} parent=31 // pred_check
          %p364 = pneg %p154
        $region50: #{tpu_custom_call.1} parent=31 // pred_check_branch
          %366 = sbr.rel (%p364) target = $region52
        $region51: #{tpu_custom_call.1} parent=31 // pred_region
          %s367 = smul.u32 2, %s43
          %369 = vsyncadd %s360, 0
          %s370 = sadd.s32 %s42, %s367
          %s371 = smul.addr %s370, 8
          %s372 = scalar_lea.hbm %s5, %s371
          %s373 = sshll.u32 %s363, 4
          %s374 = int_to_ptr.vmem [resolvable:$true] %s373
          %s375 = sshll.u32 %s372, 4
          %s376 = int_to_ptr.hbm [resolvable:$true] %s375
          %381 = dma.vmem_to_hbm [thread:$0]  %s374, 256, %s376, %s360, 128, 128, 8
        $region52: #{tpu_custom_call.1} parent=31 // pred_fallthru
          _
      $region32: #{tpu_custom_call.1} parent=5 // pred_fallthru
        _
      %p382 = scmp.le.s32.totalorder 2, %s33
      // Predicated region
      $region53: #{tpu_custom_call.1} parent=5 // pred_check
        %p383 = pneg %p382
      $region54: #{tpu_custom_call.1} parent=5 // pred_check_branch
        %385 = sbr.rel (%p383) target = $region56
      $region55: #{tpu_custom_call.1} parent=5 // pred_region
        %s386 = ssub.s32 %s33, 2
        // Predicated region
        $region57: #{tpu_custom_call.1} parent=55 // pred_check
          %p387 = pneg %p160
        $region58: #{tpu_custom_call.1} parent=55 // pred_check_branch
          %389 = sbr.rel (%p387) target = $region60
        $region59: #{tpu_custom_call.1} parent=55 // pred_region
          %s390 = sand.u32 %s145, 1
          %s391 = scalar_lea.sflag [#allocation7], %s390
          %s392 = sand.u32 %s145, 1
          %s393 = smul.addr %s392, 16
          %s394 = scalar_lea.vmem [#allocation11], %s393
          %396 = dma.done %s391, 256
        $region60: #{tpu_custom_call.1} parent=55 // pred_fallthru
          _
      $region56: #{tpu_custom_call.1} parent=5 // pred_fallthru
        _
    $region6: #{tpu_custom_call.1} parent=1 // loop_footer
      %s37 = sadd.s32 1, %s33
    $region7: #{tpu_custom_call.1} parent=1 // loop_footer_branch
      %32 = sbr.rel target = $region3
    $region8: #{tpu_custom_call.1} parent=1 // loop_exit
      _
    %397 = vsyncpa [#allocation6], 1
    %s398 = scalar_lea.sflag [#allocation6], 1
    %399 = vsyncpa %s398, 1
    %400 = vsyncpa [#allocation9], 1
    %s401 = scalar_lea.sflag [#allocation9], 1
    %402 = vsyncpa %s401, 1
    %403 = vsyncpa [#allocation7], 1
    %s404 = scalar_lea.sflag [#allocation7], 1
    %405 = vsyncpa %s404, 1

</llo_original>
